<compile_context>
chip_gen: v6e
topology: v6e:2x2x1
jax: 0.10.0
libtpu: 0.0.40
codegen_flags: <defaults>
</compile_context>

<pallas_src>
import functools

import jax
import jax.numpy as jnp
from jax.experimental import pallas as pl
from jax.experimental.pallas import tpu as pltpu


# ---------------------------------------------------------------------------
# Fused kernel: conv(1x3, pad W by 1) + BN(eval, folded) + ReLU
# ---------------------------------------------------------------------------
def temporal_conv_bn_relu_kernel(x_ref, w_ref, p_ref, o_ref, *, width):
    # x_ref: (Cin, H*W)      flattened NCHW image for one batch element
    # w_ref: (Cout, 3*Cin)   columns ordered as dw*Cin + ci  (dw = 0,1,2 taps)
    # p_ref: (Cout, 2)       [:, 0] = BN scale, [:, 1] = BN shift (conv bias folded in)
    # o_ref: (Cout, H*W)     lane-dense output tile
    cin, hw = x_ref.shape

    x = x_ref[...]  # (Cin, H*W) f32

    # Column index within each image row (to mask the zero-padding boundaries).
    col = jax.lax.broadcasted_iota(jnp.int32, (cin, hw), 1) % width
    zcol = jnp.zeros((cin, 1), jnp.float32)

    # Tap dw=0: value at w-1 (zero at w == 0 of every row).
    left = jnp.concatenate([zcol, x[:, : hw - 1]], axis=1)
    left = jnp.where(col == 0, 0.0, left)
    # Tap dw=2: value at w+1 (zero at w == width-1 of every row).
    right = jnp.concatenate([x[:, 1:], zcol], axis=1)
    right = jnp.where(col == width - 1, 0.0, right)

    # im2col patch: rows ordered dw*Cin + ci  -> single matmul over K = 3*Cin.
    patch = jnp.concatenate([left, x, right], axis=0)  # (3*Cin, H*W)

    acc = jnp.dot(w_ref[...], patch, preferred_element_type=jnp.float32)  # (Cout, H*W)

    scale = p_ref[:, 0:1]  # (Cout, 1)
    shift = p_ref[:, 1:2]  # (Cout, 1)  (conv bias + BN mean already folded in)
    acc = acc * scale + shift
    # Dropout(0.5) is identity in eval mode.
    o_ref[...] = jnp.maximum(acc, 0.0).astype(o_ref.dtype)


# ---------------------------------------------------------------------------
# Wrapper: accepts / returns NCHW (PyTorch convention), no transposes, no pads
# ---------------------------------------------------------------------------
def temporal_conv_unit_forward(x_nchw, p):
    """Pallas implementation of TemporalConvUnit.forward (eval-mode semantics)."""
    N, Cin, H, W = x_nchw.shape
    Cout = p["w"].shape[0]
    eps = 1e-5

    # Fold conv bias + BN running stats into a single per-channel scale/shift.
    scale = p["gamma"] * jax.lax.rsqrt(p["running_var"] + eps)
    shift = p["beta"] + (p["b"] - p["running_mean"]) * scale
    packed = jnp.stack([scale, shift], axis=1).astype(jnp.float32)  # (Cout, 2)

    # Weight (Cout, Cin, 3) -> (Cout, 3*Cin) with columns ordered dw*Cin + ci.
    wm = jnp.transpose(p["w"], (0, 2, 1)).reshape(Cout, 3 * Cin).astype(jnp.float32)

    # Contiguous (free) reshape: NCHW -> (N, Cin, H*W).
    x_flat = x_nchw.reshape(N, Cin, H * W).astype(jnp.float32)

    out_flat = pl.pallas_call(
        functools.partial(temporal_conv_bn_relu_kernel, width=W),
        out_shape=jax.ShapeDtypeStruct((N, Cout, H * W), jnp.float32),
        grid=(N,),
        in_specs=[
            pl.BlockSpec((None, Cin, H * W), lambda n: (n, 0, 0)),
            pl.BlockSpec((Cout, 3 * Cin), lambda n: (0, 0)),
            pl.BlockSpec((Cout, 2), lambda n: (0, 0)),
        ],
        out_specs=pl.BlockSpec((None, Cout, H * W), lambda n: (n, 0, 0)),
        compiler_params=pltpu.CompilerParams(dimension_semantics=("parallel",)),
    )(x_flat, wm, packed)

    # Contiguous (free) reshape back to NCHW.
    return out_flat.reshape(N, Cout, H, W)


# ---------------------------------------------------------------------------
# Pure-JAX reference (eval-mode), for correctness check
# ---------------------------------------------------------------------------
def reference_forward(x_nchw, p):
    x = x_nchw.astype(jnp.float32)
    w4 = p["w"][:, :, None, :]  # (Cout, Cin, 1, 3) OIHW
    y = jax.lax.conv_general_dilated(
        x, w4, window_strides=(1, 1), padding=((0, 0), (1, 1)),
        dimension_numbers=("NCHW", "OIHW", "NCHW"),
    )
    y = y + p["b"][None, :, None, None]
    eps = 1e-5
    y = (y - p["running_mean"][None, :, None, None]) * jax.lax.rsqrt(
        p["running_var"][None, :, None, None] + eps
    ) * p["gamma"][None, :, None, None] + p["beta"][None, :, None, None]
    return jnp.maximum(y, 0.0)


def init_params(key, in_channels, out_channels):
    k1, k2, k3, k4 = jax.random.split(key, 4)
    f32 = jnp.float32
    return {
        # conv weight stored as (Cout, Cin, 3)  ~ PyTorch (Cout, Cin, 1, 3) with kh=1 dropped
        "w": 0.1 * jax.random.normal(k1, (out_channels, in_channels, 3), f32),
        "b": 0.1 * jax.random.normal(k2, (out_channels,), f32),
        "gamma": 1.0 + 0.1 * jax.random.normal(k3, (out_channels,), f32),
        "beta": 0.1 * jax.random.normal(k4, (out_channels,), f32),
        "running_mean": jnp.zeros((out_channels,), f32),
        "running_var": jnp.ones((out_channels,), f32),
    }


if __name__ == "__main__":
    in_channels, out_channels = 4, 8
    N, H, W = 2, 16, 16

    key = jax.random.PRNGKey(0)
    kx, kp = jax.random.split(key)
    x = jax.random.normal(kx, (N, in_channels, H, W), jnp.float32)  # NCHW like PyTorch
    params = init_params(kp, in_channels, out_channels)

    out = jax.block_until_ready(temporal_conv_unit_forward(x, params))
    ref = jax.block_until_ready(reference_forward(x, params))

    assert out.shape == (N, out_channels, H, W), out.shape
    assert jnp.allclose(out, ref, atol=1e-4, rtol=1e-4), float(jnp.max(jnp.abs(out - ref)))
    print("KERNEL_OK")
</pallas_src>

<mosaic_0001>
module attributes {stable_mosaic.version = 11 : i64} {
  func.func @temporal_conv_bn_relu_kernel(%arg0: i32, %arg1: memref<1x4x256xf32, #tpu.memory_space<vmem>>, %arg2: memref<8x12xf32, #tpu.memory_space<vmem>>, %arg3: memref<8x2xf32, #tpu.memory_space<vmem>>, %arg4: memref<1x8x256xf32, #tpu.memory_space<vmem>>) attributes {dimension_semantics = [#tpu.dimension_semantics<parallel>], iteration_bounds = array<i64: 2>, scalar_prefetch = 0 : i64, scratch_operands = 0 : i64, tpu.core_type = #tpu.core_type<tc>, window_params = [{transform_indices = @transform_0, window_bounds = array<i64: 1, 4, 256>}, {pipeline_mode = #tpu.pipeline_mode<synchronous>, transform_indices = @transform_1, window_bounds = array<i64: 8, 12>}, {pipeline_mode = #tpu.pipeline_mode<synchronous>, transform_indices = @transform_2, window_bounds = array<i64: 8, 2>}, {transform_indices = @transform_3, window_bounds = array<i64: 1, 8, 256>}]} {
    %c0 = arith.constant 0 : index
    %c0_0 = arith.constant 0 : index
    %c0_1 = arith.constant 0 : index
    %0 = vector.load %arg1[%c0, %c0_0, %c0_1] : memref<1x4x256xf32, #tpu.memory_space<vmem>>, vector<1x4x256xf32>
    %1 = vector.shape_cast %0 : vector<1x4x256xf32> to vector<4x256xf32>
    %2 = tpu.iota {dimensions = array<i32: 1>} : vector<4x256xi32>
    %c16_i32 = arith.constant 16 : i32
    %c0_i32 = arith.constant 0 : i32
    %3 = arith.cmpi eq, %c16_i32, %c0_i32 : i32
    %c1_i32 = arith.constant 1 : i32
    %4 = arith.select %3, %c1_i32, %c16_i32 : i32
    %5 = vector.broadcast %4 : i32 to vector<4x256xi32>
    %6 = arith.remsi %2, %5 : vector<4x256xi32>
    %c0_i32_2 = arith.constant 0 : i32
    %7 = vector.broadcast %c0_i32_2 : i32 to vector<4x256xi32>
    %8 = arith.cmpi ne, %6, %7 : vector<4x256xi32>
    %c0_i32_3 = arith.constant 0 : i32
    %9 = vector.broadcast %c0_i32_3 : i32 to vector<4x256xi32>
    %10 = arith.cmpi slt, %6, %9 : vector<4x256xi32>
    %c0_i32_4 = arith.constant 0 : i32
    %11 = arith.cmpi slt, %4, %c0_i32_4 : i32
    %12 = vector.broadcast %11 : i1 to vector<4x256xi1>
    %13 = vector.broadcast %12 : vector<4x256xi1> to vector<4x256xi1>
    %14 = arith.xori %10, %13 : vector<4x256xi1>
    %15 = arith.andi %14, %8 : vector<4x256xi1>
    %16 = vector.broadcast %4 : i32 to vector<4x256xi32>
    %17 = arith.addi %6, %16 : vector<4x256xi32>
    %18 = arith.select %15, %17, %6 : vector<4x256xi1>, vector<4x256xi32>
    %cst = arith.constant 0.000000e+00 : f32
    %19 = vector.broadcast %cst : f32 to vector<4x1xf32>
    %20 = vector.extract_strided_slice %1 {offsets = [0, 0], sizes = [4, 255], strides = [1, 1]} : vector<4x256xf32> to vector<4x255xf32>
    %21 = tpu.concatenate %19, %20 in 1 : vector<4x1xf32>, vector<4x255xf32> -> vector<4x256xf32>
    %c0_i32_5 = arith.constant 0 : i32
    %22 = vector.broadcast %c0_i32_5 : i32 to vector<4x256xi32>
    %23 = arith.cmpi eq, %18, %22 : vector<4x256xi32>
    %cst_6 = arith.constant 0.000000e+00 : f32
    %24 = vector.broadcast %cst_6 : f32 to vector<4x256xf32>
    %25 = arith.select %23, %24, %21 : vector<4x256xi1>, vector<4x256xf32>
    %26 = vector.extract_strided_slice %1 {offsets = [0, 1], sizes = [4, 255], strides = [1, 1]} : vector<4x256xf32> to vector<4x255xf32>
    %27 = tpu.concatenate %26, %19 in 1 : vector<4x255xf32>, vector<4x1xf32> -> vector<4x256xf32>
    %c15_i32 = arith.constant 15 : i32
    %28 = vector.broadcast %c15_i32 : i32 to vector<4x256xi32>
    %29 = arith.cmpi eq, %18, %28 : vector<4x256xi32>
    %cst_7 = arith.constant 0.000000e+00 : f32
    %30 = vector.broadcast %cst_7 : f32 to vector<4x256xf32>
    %31 = arith.select %29, %30, %27 : vector<4x256xi1>, vector<4x256xf32>
    %32 = tpu.concatenate %25, %1, %31 in 0 : vector<4x256xf32>, vector<4x256xf32>, vector<4x256xf32> -> vector<12x256xf32>
    %c0_8 = arith.constant 0 : index
    %c0_9 = arith.constant 0 : index
    %33 = vector.load %arg2[%c0_8, %c0_9] : memref<8x12xf32, #tpu.memory_space<vmem>>, vector<8x12xf32>
    %cst_10 = arith.constant dense<0.000000e+00> : vector<8x256xf32>
    %34 = tpu.matmul %33, %32, %cst_10 {dimension_numbers = #tpu.dot_dimension_numbers<[1], [0], [0], [1], [0, 0, 1, 1], [], []>} : vector<8x12xf32>, vector<12x256xf32>, vector<8x256xf32> -> vector<8x256xf32>
    %c0_11 = arith.constant 0 : index
    %c0_12 = arith.constant 0 : index
    %35 = vector.load %arg3[%c0_11, %c0_12] : memref<8x2xf32, #tpu.memory_space<vmem>>, vector<8x1xf32>
    %c0_13 = arith.constant 0 : index
    %c1 = arith.constant 1 : index
    %36 = vector.load %arg3[%c0_13, %c1] : memref<8x2xf32, #tpu.memory_space<vmem>>, vector<8x1xf32>
    %37 = vector.broadcast %35 : vector<8x1xf32> to vector<8x256xf32>
    %38 = arith.mulf %34, %37 : vector<8x256xf32>
    %39 = vector.broadcast %36 : vector<8x1xf32> to vector<8x256xf32>
    %40 = arith.addf %38, %39 : vector<8x256xf32>
    %cst_14 = arith.constant 0.000000e+00 : f32
    %41 = vector.broadcast %cst_14 : f32 to vector<8x256xf32>
    %42 = arith.maximumf %40, %41 : vector<8x256xf32>
    %c0_15 = arith.constant 0 : index
    %c0_16 = arith.constant 0 : index
    %c0_17 = arith.constant 0 : index
    %43 = vector.load %arg4[%c0_15, %c0_16, %c0_17] : memref<1x8x256xf32, #tpu.memory_space<vmem>>, vector<1x8x256xf32>
    %44 = vector.shape_cast %43 : vector<1x8x256xf32> to vector<8x256xf32>
    %45 = vector.shape_cast %42 : vector<8x256xf32> to vector<1x8x256xf32>
    tpu.vector_store %arg4[%c0_15, %c0_16, %c0_17], %45 {strides = array<i32>} : memref<1x8x256xf32, #tpu.memory_space<vmem>>, vector<1x8x256xf32>,
    return
  }
  func.func @transform_0(%arg0: i32) -> (i32, i32, i32) {
    %c0_i32 = arith.constant 0 : i32
    %c0_i32_0 = arith.constant 0 : i32
    %c0_i32_1 = arith.constant 0 : i32
    return %arg0, %c0_i32, %c0_i32_0 : i32, i32, i32
  }
  func.func @transform_1(%arg0: i32) -> (i32, i32) {
    %c0_i32 = arith.constant 0 : i32
    %c0_i32_0 = arith.constant 0 : i32
    %c0_i32_1 = arith.constant 0 : i32
    return %c0_i32, %c0_i32_0 : i32, i32
  }
  func.func @transform_2(%arg0: i32) -> (i32, i32) {
    %c0_i32 = arith.constant 0 : i32
    %c0_i32_0 = arith.constant 0 : i32
    %c0_i32_1 = arith.constant 0 : i32
    return %c0_i32, %c0_i32_0 : i32, i32
  }
  func.func @transform_3(%arg0: i32) -> (i32, i32, i32) {
    %c0_i32 = arith.constant 0 : i32
    %c0_i32_0 = arith.constant 0 : i32
    %c0_i32_1 = arith.constant 0 : i32
    return %arg0, %c0_i32, %c0_i32_0 : i32, i32, i32
  }
}

</mosaic_0001>

<llo_original>
// kernel: tpu_custom_call.1
$region0: #{tpu_custom_call.1}
  #allocation0 [shape = 'u32[]', space=smem, size = 0x4, offset = 0x4, fixed_abs, tag = 'smem constant byte address 0x4 - core index']
  #allocation1 [shape = 'u32[144,128]{1,0:T(1,128)}', space=vmem, size = 0x12000, scoped, tag = 'internal scratch']
  %s0 = inlined_call_operand.hbm [shape: f32[2,4,256], index: 0, kind: input, shape index: {}]
  %s1 = inlined_call_operand.vmem [shape: f32[8,12], index: 1, kind: input, shape index: {}]
  %s2 = inlined_call_operand.vmem [shape: f32[8,2], index: 2, kind: input, shape index: {}]
  %s3 = inlined_call_operand.hbm [shape: f32[2,8,256], index: 3, kind: output, shape index: {}]
  %s4 = sld [smem:[#allocation0]]
  $region49: #{tpu_custom_call.1} parent=0
    _
  %s6 = ssub.s32 1, %s4
  %s7 = scalar_select 0, %s6, %s4
  $region1: #{tpu_custom_call.1} parent=0
    #allocation2 [shape = 'u8[8192]{0}', space=vmem, size = 0x2000, scoped, tag = 'input window, operand 0']
    #allocation3 [shape = 's32[2]{0}', space=sflag, size = 0x8, scoped, tag = 'scoped memory for tpu_custom_call.1']
    #allocation4 [shape = 's32[2]{0}', space=sflag, size = 0x8, scoped, tag = 'scoped memory for tpu_custom_call.1']
    #allocation5 [shape = 'u8[16384]{0}', space=vmem, size = 0x4000, scoped, tag = 'output window, operand 0']
    %8 = vsyncpa [#allocation3], 0
    %s9 = scalar_lea.sflag [#allocation3], 1
    %10 = vsyncpa %s9, 0
    %11 = vsyncpa [#allocation4], 0
    %s12 = scalar_lea.sflag [#allocation4], 1
    %13 = vsyncpa %s12, 0
    loop: start=0, step=1, limit=4
    $region2: #{tpu_custom_call.1} parent=1 // loop_pre_header
      _
    $region3: #{tpu_custom_call.1} parent=1 // loop_header
      %s15 = sphi 0, %s19
      %p16 = scmp.ge.s32.totalorder %s15, 4
      %s25 = sphi 0, %s27
      %s28 = sphi 0, %s25
      %s29 = sphi 0, %s28
      %s45 = sphi 0, %s29
      %s49 = sphi 0, %s49
      %s51 = sphi 0, %s49
      %s52 = sphi 0, %s51
      %s66 = sphi 0, %s52
      %s70 = sphi 0, %s70
      %s72 = sphi 0, %s70
      %s73 = sphi 0, %s72
      %s87 = sphi 0, %s73
      %s93 = sphi 0, %s95
      %s96 = sphi 0, %s93
      %s97 = sphi 0, %s96
      %s113 = sphi 0, %s97
    $region4: #{tpu_custom_call.1} parent=1 // loop_header_branch
      %18 = sbr.rel (%p16) target = $region8
    $region5: #{tpu_custom_call.1} parent=1 // loop_body
      %s20 = ssub.s32 %s15, 1
      %s21 = ssub.s32 %s15, 2
      %s22 = sadd.s32 %s15, 1
      %s23 = ssub.s32 %s15, %s22
      %p24 = scmp.eq.s32.totalorder %s23, 0
      %s26 = sadd.s32 %s25, 1
      %s27 = scalar_select %p24, %s25, %s26
      %p30 = pneg %p24
      %p31 = scmp.eq.s32.totalorder %s15, 1
      %p32 = por %p30, %p31
      %p33 = scmp.ne.s32.totalorder %s25, %s28
      %p34 = scmp.eq.s32.totalorder %s15, 0
      %p35 = por %p33, %p34
      %p36 = scmp.ne.s32.totalorder %s25, %s28
      %p37 = scmp.eq.s32.totalorder %s20, 1
      %p38 = por %p36, %p37
      %p39 = scmp.ne.s32.totalorder %s28, %s29
      %p40 = scmp.eq.s32.totalorder %s20, 0
      %p41 = por %p39, %p40
      %p42 = scmp.ne.s32.totalorder %s28, %s29
      %p43 = scmp.eq.s32.totalorder %s21, 1
      %p44 = por %p42, %p43
      %p46 = scmp.ne.s32.totalorder %s29, %s45
      %p47 = scmp.eq.s32.totalorder %s21, 0
      %p48 = por %p46, %p47
      %s50 = sadd.s32 %s49, 1
      %p53 = scmp.eq.s32.totalorder %s15, 1
      %p54 = scmp.ne.s32.totalorder %s49, %s51
      %p55 = scmp.eq.s32.totalorder %s15, 0
      %p56 = por %p54, %p55
      %p57 = scmp.ne.s32.totalorder %s49, %s51
      %p58 = scmp.eq.s32.totalorder %s20, 1
      %p59 = por %p57, %p58
      %p60 = scmp.ne.s32.totalorder %s51, %s52
      %p61 = scmp.eq.s32.totalorder %s20, 0
      %p62 = por %p60, %p61
      %p63 = scmp.ne.s32.totalorder %s51, %s52
      %p64 = scmp.eq.s32.totalorder %s21, 1
      %p65 = por %p63, %p64
      %p67 = scmp.ne.s32.totalorder %s52, %s66
      %p68 = scmp.eq.s32.totalorder %s21, 0
      %p69 = por %p67, %p68
      %s71 = sadd.s32 %s70, 1
      %p74 = scmp.eq.s32.totalorder %s15, 1
      %p75 = scmp.ne.s32.totalorder %s70, %s72
      %p76 = scmp.eq.s32.totalorder %s15, 0
      %p77 = por %p75, %p76
      %p78 = scmp.ne.s32.totalorder %s70, %s72
      %p79 = scmp.eq.s32.totalorder %s20, 1
      %p80 = por %p78, %p79
      %p81 = scmp.ne.s32.totalorder %s72, %s73
      %p82 = scmp.eq.s32.totalorder %s20, 0
      %p83 = por %p81, %p82
      %p84 = scmp.ne.s32.totalorder %s72, %s73
      %p85 = scmp.eq.s32.totalorder %s21, 1
      %p86 = por %p84, %p85
      %p88 = scmp.ne.s32.totalorder %s73, %s87
      %p89 = scmp.eq.s32.totalorder %s21, 0
      %p90 = por %p88, %p89
      %s91 = ssub.s32 %s15, %s22
      %p92 = scmp.eq.s32.totalorder %s91, 0
      %s94 = sadd.s32 %s93, 1
      %s95 = scalar_select %p92, %s93, %s94
      %p98 = pneg %p92
      %p99 = scmp.eq.s32.totalorder %s15, 1
      %p100 = por %p98, %p99
      %p101 = scmp.ne.s32.totalorder %s93, %s96
      %p102 = scmp.eq.s32.totalorder %s15, 0
      %p103 = por %p101, %p102
      %p104 = scmp.ne.s32.totalorder %s93, %s96
      %p105 = scmp.eq.s32.totalorder %s20, 1
      %p106 = por %p104, %p105
      %p107 = scmp.ne.s32.totalorder %s96, %s97
      %p108 = scmp.eq.s32.totalorder %s20, 0
      %p109 = por %p107, %p108
      %p110 = scmp.ne.s32.totalorder %s96, %s97
      %p111 = scmp.eq.s32.totalorder %s21, 1
      %p112 = por %p110, %p111
      %p114 = scmp.ne.s32.totalorder %s97, %s113
      %p115 = scmp.eq.s32.totalorder %s21, 0
      %p116 = por %p114, %p115
      %p117 = scmp.le.s32.totalorder 1, %s15
      %p118 = scmp.lt.s32.totalorder %s15, 3
      %p119 = pnand %p117, %p118
      %p120 = pneg %p119
      // Predicated region
      $region9: #{tpu_custom_call.1} parent=5 // pred_check
        _
      $region10: #{tpu_custom_call.1} parent=5 // pred_check_branch
        %122 = sbr.rel (%p119) target = $region12
      $region11: #{tpu_custom_call.1} parent=5 // pred_region
        %s123 = ssub.s32 %s15, 1
        // Predicated region
        $region13: #{tpu_custom_call.1} parent=11 // pred_check
          %p124 = pneg %p62
        $region14: #{tpu_custom_call.1} parent=11 // pred_check_branch
          %126 = sbr.rel (%p124) target = $region16
        $region15: #{tpu_custom_call.1} parent=11 // pred_region
          _
        $region16: #{tpu_custom_call.1} parent=11 // pred_fallthru
          _
        // Predicated region
        $region17: #{tpu_custom_call.1} parent=11 // pred_check
          %p127 = pneg %p83
        $region18: #{tpu_custom_call.1} parent=11 // pred_check_branch
          %129 = sbr.rel (%p127) target = $region20
        $region19: #{tpu_custom_call.1} parent=11 // pred_region
          _
        $region20: #{tpu_custom_call.1} parent=11 // pred_fallthru
          _
      $region12: #{tpu_custom_call.1} parent=5 // pred_fallthru
        _
      %p130 = scmp.lt.s32.totalorder %s15, 2
      // Predicated region
      $region21: #{tpu_custom_call.1} parent=5 // pred_check
        %p131 = pneg %p130
      $region22: #{tpu_custom_call.1} parent=5 // pred_check_branch
        %133 = sbr.rel (%p131) target = $region24
      $region23: #{tpu_custom_call.1} parent=5 // pred_region
        // Predicated region
        $region25: #{tpu_custom_call.1} parent=23 // pred_check
          %p134 = pneg %p35
        $region26: #{tpu_custom_call.1} parent=23 // pred_check_branch
          %136 = sbr.rel (%p134) target = $region28
        $region27: #{tpu_custom_call.1} parent=23 // pred_region
          %s137 = sand.u32 %s25, 1
          %s138 = scalar_lea.sflag [#allocation3], %s137
          %s139 = sand.u32 %s25, 1
          %s140 = smul.addr %s139, 8
          %s141 = scalar_lea.vmem [#allocation2], %s140
          %s143 = ssub.s32 128, 128
          %144 = vsyncadd %s138, %s143
          %s145 = smul.addr %s15, 2
          %s146 = smul.addr %s145, 64
          %s147 = scalar_lea.hbm %s0, %s146
          %s149 = sshll.u32 %s141, 4
          %s150 = int_to_ptr.vmem [resolvable:$true] %s149
          %152 = dma.hbm_to_vmem [thread:$0]  %s147, 128, %s150, %s138
        $region28: #{tpu_custom_call.1} parent=23 // pred_fallthru
          _
      $region24: #{tpu_custom_call.1} parent=5 // pred_fallthru
        _
      %p153 = scmp.le.s32.totalorder 1, %s15
      %p154 = scmp.lt.s32.totalorder %s15, 3
      %p155 = pnand %p153, %p154
      %p156 = pneg %p155
      // Predicated region
      $region29: #{tpu_custom_call.1} parent=5 // pred_check
        _
      $region30: #{tpu_custom_call.1} parent=5 // pred_check_branch
        %158 = sbr.rel (%p155) target = $region32
      $region31: #{tpu_custom_call.1} parent=5 // pred_region
        %s159 = ssub.s32 %s15, 1
        %s160 = sand.u32 %s28, 1
        %s161 = scalar_lea.sflag [#allocation3], %s160
        %s162 = sand.u32 %s28, 1
        %s163 = smul.addr %s162, 8
        %s164 = scalar_lea.vmem [#allocation2], %s163
        // Predicated region
        $region33: #{tpu_custom_call.1} parent=31 // pred_check
          %p165 = pneg %p41
        $region34: #{tpu_custom_call.1} parent=31 // pred_check_branch
          %167 = sbr.rel (%p165) target = $region36
        $region35: #{tpu_custom_call.1} parent=31 // pred_region
          %168 = dma.done %s161, 128
        $region36: #{tpu_custom_call.1} parent=31 // pred_fallthru
          _
        %s169 = sand.u32 %s28, 1
        %s170 = scalar_lea.sflag [#allocation3], %s169
        %s171 = sand.u32 %s28, 1
        %s172 = smul.addr %s171, 8
        %s173 = scalar_lea.vmem [#allocation2], %s172
        %p174 = pneg %p41
        %p175 = pneg %p38
        %p176 = pneg %p62
        %p177 = pneg %p59
        %p178 = pneg %p83
        %p179 = pneg %p80
        %p180 = pneg %p109
        %p181 = pneg %p106
        %s182 = sand.u32 %s96, 1
        %s183 = scalar_lea.sflag [#allocation4], %s182
        %s184 = sand.u32 %s96, 1
        %s185 = smul.addr %s184, 16
        %s186 = scalar_lea.vmem [#allocation5], %s185
        %v187 = vld [vmem:[%s164] sm:$0xff]
        %v188 = vlaneseq
        %v189 = vand.u32 %v188, 127
        %v190 = vadd.s32 %v189, 128
        %vm191 = vcmp.lt.s32.totalorder %v189, 0
        %v192 = vsub.s32 0, %v189
        %v193 = vsel %vm191, %v192, %v189
        %v194 = vshrl.u32 %v193, 4
        %v195 = vand.u32 %v193, 15
        %v196 = vsub.s32 0, %v195
        %v197 = vsel %vm191, %v196, %v195
        %vm198 = vcmp.lt.s32.totalorder %v190, 0
        %v199 = vsub.s32 0, %v190
        %v200 = vsel %vm198, %v199, %v190
        %v201 = vshrl.u32 %v200, 4
        %v202 = vand.u32 %v200, 15
        %v203 = vsub.s32 0, %v202
        %v204 = vsel %vm198, %v203, %v202
        %vm205 = vcmp.ne.s32.totalorder %v197, 0
        %vm206 = vcmp.ne.s32.totalorder %v204, 0
        %vm207 = vcmp.lt.s32.totalorder %v197, 0
        %vm208 = vcmp.lt.s32.totalorder %v204, 0
        %vm209 = vmand %vm207, %vm205
        %vm210 = vmand %vm208, %vm206
        %v211 = vadd.s32 %v197, 16
        %v212 = vadd.s32 %v204, 16
        %v213 = vsel %vm209, %v211, %v197
        %v214 = vsel %vm210, %v212, %v204
        %v216 = vcombine.high %v187, %v187
        %217 = vrot.lane.b32.xlu0 %v187, 1
        %v218 = vpop.permute.xlu0 %217
        %219 = vrot.lane.b32.xlu0 %v216, 1
        %v220 = vpop.permute.xlu0 %219
        %vm221 = vcmask 7168
        %v222 = vsel %vm221, %v218, %v220
        %v225 = vsel %vm221, 0.0, %v218
        %vm226 = vcmp.eq.s32.totalorder %v213, 0
        %vm227 = vcmp.eq.s32.totalorder %v214, 0
        %v228 = vsel %vm226, 0.0, %v225
        %v229 = vsel %vm227, 0.0, %v222
        %230 = vrot.lane.b32.xlu0 %v187, 127
        %v231 = vpop.permute.xlu0 %230
        %232 = vrot.lane.b32.xlu0 %v216, 127
        %v233 = vpop.permute.xlu0 %232
        %vm234 = vcmask 1039360
        %v235 = vsel %vm234, %v231, %v233
        %v238 = vsel %vm234, %v233, 0.0
        %vm239 = vcmp.eq.s32.totalorder %v213, 15
        %vm240 = vcmp.eq.s32.totalorder %v214, 15
        %v241 = vsel %vm239, 0.0, %v235
        %v242 = vsel %vm240, 0.0, %v238
        %v243 = vcombine.low %v187, %v187
        %vm245 = vcmask 1043456
        %v246 = vsel %vm245, %v228, %v243
        %v247 = vsel %vm245, %v229, %v187
        %v248 = vld [vmem:[%s1] sm:$0xff]
        %vm249 = vcmask 97280
        %v251 = vsel %vm249, %v248, 0
        %v254 = vsel %vm245, %v241, 0
        %v257 = vsel %vm245, %v242, 0
        %259 = vmatprep.subr.mxu0 0.0
        %260 = vmatpush1.msra.mxu0 0.0
        %261 = vmatprep.subr.mxu0 0.0
        %262 = vmatpush1.msra.mxu0 0.0
        %263 = vmatprep.subr.mxu0 0.0
        %264 = vmatpush1.msra.mxu0 0.0
        %265 = vmatprep.subr.mxu0 0.0
        %266 = vmatpush1.msra.mxu0 0.0
        %267 = vmatprep.subr.mxu0 0.0
        %268 = vmatpush1.msra.mxu0 0.0
        %269 = vmatprep.subr.mxu0 0.0
        %270 = vmatpush1.msra.mxu0 0.0
        %271 = vmatprep.subr.mxu0 0.0
        %272 = vmatpush1.msra.mxu0 0.0
        %273 = vmatprep.subr.mxu0 0.0
        %274 = vmatpush1.msra.mxu0 0.0
        %275 = vmatprep.subr.mxu0 0.0
        %276 = vmatpush1.msra.mxu0 0.0
        %277 = vmatprep.subr.mxu0 0.0
        %278 = vmatpush1.msra.mxu0 0.0
        %279 = vmatprep.subr.mxu0 0.0
        %280 = vmatpush1.msra.mxu0 0.0
        %281 = vmatprep.subr.mxu0 0.0
        %282 = vmatpush1.msra.mxu0 0.0
        %283 = vmatprep.subr.mxu0 0.0
        %284 = vmatpush1.msra.mxu0 0.0
        %285 = vmatprep.subr.mxu0 0.0
        %286 = vmatpush1.msra.mxu0 0.0
        %287 = vmatprep.subr.mxu0 %v257
        %288 = vmatpush1.msra.mxu0 %v254
        %289 = vmatprep.subr.mxu0 %v247
        %290 = vmatpush1.msra.mxu0 %v246
        %291 = vmatprep.subr.mxu0 0.0
        %292 = vmatpush2.msra.mxu0 0.0
        %293 = vmatprep.subr.mxu0 0.0
        %294 = vmatpush2.msra.mxu0 0.0
        %295 = vmatprep.subr.mxu0 0.0
        %296 = vmatpush2.msra.mxu0 0.0
        %297 = vmatprep.subr.mxu0 0.0
        %298 = vmatpush2.msra.mxu0 0.0
        %299 = vmatprep.subr.mxu0 0.0
        %300 = vmatpush2.msra.mxu0 0.0
        %301 = vmatprep.subr.mxu0 0.0
        %302 = vmatpush2.msra.mxu0 0.0
        %303 = vmatprep.subr.mxu0 0.0
        %304 = vmatpush2.msra.mxu0 0.0
        %305 = vmatprep.subr.mxu0 0.0
        %306 = vmatpush2.msra.mxu0 0.0
        %307 = vmatprep.subr.mxu0 0.0
        %308 = vmatpush2.msra.mxu0 0.0
        %309 = vmatprep.subr.mxu0 0.0
        %310 = vmatpush2.msra.mxu0 0.0
        %311 = vmatprep.subr.mxu0 0.0
        %312 = vmatpush2.msra.mxu0 0.0
        %313 = vmatprep.subr.mxu0 0.0
        %314 = vmatpush2.msra.mxu0 0.0
        %315 = vmatprep.subr.mxu0 0.0
        %316 = vmatpush2.msra.mxu0 0.0
        %317 = vmatprep.subr.mxu0 0.0
        %318 = vmatpush2.msra.mxu0 0.0
        %319 = vmatprep.subr.mxu0 0.0
        %320 = vmatpush2.msra.mxu0 0.0
        %321 = vmatprep.subr.mxu0 0.0
        %322 = vmatpush2.msra.mxu0 0.0
        %323 = vmatprep.mubr.f32.mxu0 0.0
        %324 = vmatmul.mubr.f32.gmra.mxu0 %v251
        %v325 = vpop.f32.mrf.mxu0
        %v326 = vadd.f32 0.0, %v325
        %v327 = vpop.f32.mrf.mxu0
        %v328 = vadd.f32 0.0, %v327
        %329 = vdwg.mxu0
        %v330 = vld [vmem:[%s2] sm:$0xff]
        %332 = vset.pattern.permute.xlu0 0
        %333 = vperm.xlu0 %332, %v330
        %v334 = vpop.permute.xlu0 %333
        %v336 = vmul.f32 %v326, %v334
        %v337 = vmul.f32 %v328, %v334
        %338 = vset.pattern.permute.xlu0 1
        %339 = vperm.xlu0 %338, %v330
        %v340 = vpop.permute.xlu0 %339
        %v342 = vadd.f32 %v336, %v340
        %v343 = vadd.f32 %v337, %v340
        %v344 = vmax.f32 %v342, 0.0
        %v345 = vmax.f32 %v343, 0.0
        %346 = vst [vmem:[%s186] sm:$0xff] %v344
        %347 = vst [vmem:[%s186 + $0x8] sm:$0xff] %v345
        %s348 = sand.u32 %s96, 1
        %s349 = scalar_lea.sflag [#allocation4], %s348
        %s350 = sand.u32 %s96, 1
        %s351 = smul.addr %s350, 16
        %s352 = scalar_lea.vmem [#allocation5], %s351
        // Predicated region
        $region37: #{tpu_custom_call.1} parent=31 // pred_check
          %p353 = pneg %p106
        $region38: #{tpu_custom_call.1} parent=31 // pred_check_branch
          %355 = sbr.rel (%p353) target = $region40
        $region39: #{tpu_custom_call.1} parent=31 // pred_region
          %s357 = ssub.s32 256, 256
          %358 = vsyncadd %s349, %s357
          %s359 = smul.addr %s20, 2
          %s360 = smul.addr %s359, 128
          %s361 = scalar_lea.hbm %s3, %s360
          %s363 = sshll.u32 %s352, 4
          %s364 = int_to_ptr.vmem [resolvable:$true] %s363
          %366 = dma.vmem_to_hbm [thread:$0]  %s364, 256, %s361, %s349
        $region40: #{tpu_custom_call.1} parent=31 // pred_fallthru
          _
      $region32: #{tpu_custom_call.1} parent=5 // pred_fallthru
        _
      %p367 = scmp.le.s32.totalorder 2, %s15
      // Predicated region
      $region41: #{tpu_custom_call.1} parent=5 // pred_check
        %p368 = pneg %p367
      $region42: #{tpu_custom_call.1} parent=5 // pred_check_branch
        %370 = sbr.rel (%p368) target = $region44
      $region43: #{tpu_custom_call.1} parent=5 // pred_region
        %s371 = ssub.s32 %s15, 2
        // Predicated region
        $region45: #{tpu_custom_call.1} parent=43 // pred_check
          %p372 = pneg %p112
        $region46: #{tpu_custom_call.1} parent=43 // pred_check_branch
          %374 = sbr.rel (%p372) target = $region48
        $region47: #{tpu_custom_call.1} parent=43 // pred_region
          %s375 = sand.u32 %s97, 1
          %s376 = scalar_lea.sflag [#allocation4], %s375
          %s377 = sand.u32 %s97, 1
          %s378 = smul.addr %s377, 16
          %s379 = scalar_lea.vmem [#allocation5], %s378
          %380 = dma.done %s376, 256
        $region48: #{tpu_custom_call.1} parent=43 // pred_fallthru
          _
      $region44: #{tpu_custom_call.1} parent=5 // pred_fallthru
        _
    $region6: #{tpu_custom_call.1} parent=1 // loop_footer
      %s19 = sadd.s32 1, %s15
    $region7: #{tpu_custom_call.1} parent=1 // loop_footer_branch
      %14 = sbr.rel target = $region3
    $region8: #{tpu_custom_call.1} parent=1 // loop_exit
      _
    %381 = vsyncpa [#allocation3], 1
    %s382 = scalar_lea.sflag [#allocation3], 1
    %383 = vsyncpa %s382, 1
    %384 = vsyncpa [#allocation4], 1
    %s385 = scalar_lea.sflag [#allocation4], 1
    %386 = vsyncpa %s385, 1

</llo_original>
